<compile_context>
chip_gen: v6e
topology: v6e:2x2x1
jax: 0.10.0
libtpu: 0.0.40
codegen_flags: <defaults>
</compile_context>

<pallas_src>
import functools

import jax
import jax.numpy as jnp
from jax.experimental import pallas as pl
from jax.experimental.pallas import tpu as pltpu


# Only split the copy into multiple outstanding DMAs for very large buffers.
_CHUNK_THRESHOLD_BYTES = 64 << 20  # 64 MiB


def _make_hbm_copy_kernel(num_chunks):
    """HBM->HBM copy kernel over a (num_chunks, per_chunk) flattened buffer.

    All chunk DMAs are started back-to-back (overlapping descriptor-issue
    latency / engaging multiple DMA engines), then all are waited on.  No
    VMEM staging, no grid.
    """

    def kernel(x_hbm, o_hbm, sems):
        copies = [
            pltpu.make_async_copy(x_hbm.at[i], o_hbm.at[i], sems.at[i])
            for i in range(num_chunks)
        ]
        for cp in copies:
            cp.start()
        for cp in copies:
            cp.wait()

    return kernel


def _pick_num_chunks(total_elems, nbytes):
    if nbytes < _CHUNK_THRESHOLD_BYTES:
        return 1
    for c in (8, 4, 2):
        if total_elems % c == 0:
            return c
    return 1


@functools.lru_cache(maxsize=None)
def _build_materialized_identity(shape, dtype_name, num_chunks):
    """Build (and cache) a jitted HBM->HBM copy for a given shape/dtype."""
    dtype = jnp.dtype(dtype_name)
    total = 1
    for d in shape:
        total *= int(d)
    assert total % num_chunks == 0
    per_chunk = total // num_chunks
    nbytes = total * dtype.itemsize

    copy_call = pl.pallas_call(
        _make_hbm_copy_kernel(num_chunks),
        out_shape=jax.ShapeDtypeStruct((num_chunks, per_chunk), dtype),
        in_specs=[pl.BlockSpec(memory_space=pl.ANY)],
        out_specs=pl.BlockSpec(memory_space=pl.ANY),
        scratch_shapes=[pltpu.SemaphoreType.DMA((num_chunks,))],
        cost_estimate=pl.CostEstimate(
            flops=0, transcendentals=0, bytes_accessed=2 * nbytes
        ),
    )

    @jax.jit
    def run(x):
        flat = x.reshape(num_chunks, per_chunk)  # contiguous, layout no-op
        out = copy_call(flat)
        return out.reshape(shape)

    return run


def _materialized_identity(hidden_states, num_chunks=None):
    shape = tuple(int(d) for d in hidden_states.shape)
    dtype = jnp.dtype(hidden_states.dtype)
    total = 1
    for d in shape:
        total *= d
    nbytes = total * dtype.itemsize
    if num_chunks is None:
        num_chunks = _pick_num_chunks(total, nbytes)
    run = _build_materialized_identity(shape, str(dtype), num_chunks)
    return run(hidden_states)


def roberta_self_attention_identity(
    hidden_states,
    attention_mask=None,
    head_mask=None,
    encoder_hidden_states=None,
    encoder_attention_mask=None,
    past_key_value=None,
    output_attentions=False,
    *,
    materialize=False,
):
    """Mirror of RobertaSelfAttention_identity.forward.

    Returns a tuple `(hidden_states,)` exactly like the PyTorch module.

    By default this is a zero-cost pass-through (no kernel launch, no HBM
    traffic) — the optimal implementation of an identity module on every TPU
    generation.  Set `materialize=True` to force a fresh output buffer
    produced by direct HBM->HBM DMA(s) in a Pallas kernel (useful when the
    caller needs a distinct buffer, e.g. for donation/aliasing reasons).
    """
    if output_attentions:
        # TODO(synk): reference module references an undefined
        # `attention_probs` when output_attentions=True; that branch is not
        # reproducible (it would raise NameError in PyTorch as well).
        raise NotImplementedError(
            "output_attentions=True is ill-defined in the reference module"
        )

    if not materialize:
        # Highest-value optimization from the review: the module is a pure
        # identity, so skip the kernel entirely.  NOTE: the returned array
        # aliases the input; use materialize=True in donation contexts.
        return (hidden_states,)

    return (_materialized_identity(hidden_states),)


if __name__ == "__main__":
    key = jax.random.PRNGKey(0)
    B, S, H = 2, 8, 32
    hidden_states = jax.random.normal(key, (B, S, H), dtype=jnp.float32)

    # Default (recommended) path: zero-copy pass-through.
    (out_fast,) = roberta_self_attention_identity(hidden_states)
    out_fast = jax.block_until_ready(out_fast)
    assert out_fast.shape == hidden_states.shape
    assert out_fast.dtype == hidden_states.dtype
    assert bool(jnp.all(out_fast == hidden_states))

    # Materialized path: exercises the single HBM->HBM DMA Pallas kernel.
    (out_copy,) = roberta_self_attention_identity(hidden_states, materialize=True)
    out_copy = jax.block_until_ready(out_copy)
    assert out_copy.shape == hidden_states.shape
    assert out_copy.dtype == hidden_states.dtype
    assert bool(jnp.all(out_copy == hidden_states))

    # Exercise the multi-chunk DMA code path (normally only used for >=64 MiB
    # buffers on v7x) at a small size to verify correctness.
    out_chunked = _materialized_identity(hidden_states, num_chunks=2)
    out_chunked = jax.block_until_ready(out_chunked)
    assert out_chunked.shape == hidden_states.shape
    assert out_chunked.dtype == hidden_states.dtype
    assert bool(jnp.all(out_chunked == hidden_states))

    print("KERNEL_OK")
</pallas_src>

<mosaic_0001>
module attributes {stable_mosaic.version = 11 : i64} {
  func.func @kernel(%arg0: memref<1x512xf32, #tpu.memory_space<any>>, %arg1: memref<1x512xf32, #tpu.memory_space<any>>, %arg2: memref<1x!tpu.dma_semaphore, #tpu.memory_space<semaphore_mem>>) attributes {dimension_semantics = [], scalar_prefetch = 0 : i64, scratch_operands = 1 : i64, tpu.core_type = #tpu.core_type<tc>} {
    %c0_i32 = arith.constant 0 : i32
    %c0_i32_0 = arith.constant 0 : i32
    %c0_i32_1 = arith.constant 0 : i32
    %c0_i32_2 = arith.constant 0 : i32
    %0 = tpu.memref_slice %arg0[%c0_i32, %c0_i32_2] : memref<1x512xf32, #tpu.memory_space<any>> -> memref<1x512xf32, #tpu.memory_space<any>>
    %1 = tpu.memref_squeeze %0 : memref<1x512xf32, #tpu.memory_space<any>> -> memref<512xf32, #tpu.memory_space<any>>
    %c0_i32_3 = arith.constant 0 : i32
    %2 = tpu.memref_slice %arg1[%c0_i32_0, %c0_i32_3] : memref<1x512xf32, #tpu.memory_space<any>> -> memref<1x512xf32, #tpu.memory_space<any>>
    %3 = tpu.memref_squeeze %2 : memref<1x512xf32, #tpu.memory_space<any>> -> memref<512xf32, #tpu.memory_space<any>>
    %4 = tpu.memref_slice %arg2[%c0_i32_1] : memref<1x!tpu.dma_semaphore, #tpu.memory_space<semaphore_mem>> -> memref<1x!tpu.dma_semaphore, #tpu.memory_space<semaphore_mem>>
    %5 = tpu.memref_squeeze %4 : memref<1x!tpu.dma_semaphore, #tpu.memory_space<semaphore_mem>> -> memref<!tpu.dma_semaphore, #tpu.memory_space<semaphore_mem>>
    tpu.enqueue_dma source(%1 : memref<512xf32, #tpu.memory_space<any>>) target(%3 : memref<512xf32, #tpu.memory_space<any>>) target_semaphore(%5 : memref<!tpu.dma_semaphore, #tpu.memory_space<semaphore_mem>>)
    %c0_i32_4 = arith.constant 0 : i32
    %c0_i32_5 = arith.constant 0 : i32
    %c0_i32_6 = arith.constant 0 : i32
    %c0_i32_7 = arith.constant 0 : i32
    %6 = tpu.memref_slice %arg0[%c0_i32_4, %c0_i32_7] : memref<1x512xf32, #tpu.memory_space<any>> -> memref<1x512xf32, #tpu.memory_space<any>>
    %7 = tpu.memref_squeeze %6 : memref<1x512xf32, #tpu.memory_space<any>> -> memref<512xf32, #tpu.memory_space<any>>
    %c0_i32_8 = arith.constant 0 : i32
    %8 = tpu.memref_slice %arg1[%c0_i32_5, %c0_i32_8] : memref<1x512xf32, #tpu.memory_space<any>> -> memref<1x512xf32, #tpu.memory_space<any>>
    %9 = tpu.memref_squeeze %8 : memref<1x512xf32, #tpu.memory_space<any>> -> memref<512xf32, #tpu.memory_space<any>>
    %10 = tpu.memref_slice %arg2[%c0_i32_6] : memref<1x!tpu.dma_semaphore, #tpu.memory_space<semaphore_mem>> -> memref<1x!tpu.dma_semaphore, #tpu.memory_space<semaphore_mem>>
    %11 = tpu.memref_squeeze %10 : memref<1x!tpu.dma_semaphore, #tpu.memory_space<semaphore_mem>> -> memref<!tpu.dma_semaphore, #tpu.memory_space<semaphore_mem>>
    tpu.wait_dma2 semaphore(%11 : memref<!tpu.dma_semaphore, #tpu.memory_space<semaphore_mem>>) src(%7 : memref<512xf32, #tpu.memory_space<any>>) dst(%9 : memref<512xf32, #tpu.memory_space<any>>)
    return
  }
}

</mosaic_0001>

<llo_original>
// kernel: run.1
$region0: #{run.1}
  #allocation0 [shape = 'u32[]', space=smem, size = 0x4, offset = 0x4, fixed_abs, tag = 'smem constant byte address 0x4 - core index']
  #allocation1 [shape = 'u32[144,128]{1,0:T(1,128)}', space=vmem, size = 0x12000, scoped, tag = 'internal scratch']
  #allocation2 [shape = 's32[1]{0}', space=sflag, size = 0x4, scoped, tag = 'scratch operand']
  #allocation3 [shape = 's32[]', space=sflag, size = 0x4, offset = 0, fixed_abs, tag = 'sflag constant byte address 0x0 - dummy sync flag']
  %s0 = inlined_call_operand.vmem [shape: f32[1,512], index: 0, kind: input, shape index: {}]
  %s1 = inlined_call_operand.vmem [shape: f32[1,512], index: 1, kind: output, shape index: {}]
  %s2 = sld [smem:[#allocation0]]
  $region32: #{run.1} parent=0
    _
  %s4 = ssub.s32 1, %s2
  %s5 = scalar_select 0, %s4, %s2
  %p7 = scmp.lt.u32.totalorder 4, 8
  %p8 = pneg %p7
  // Predicated region
  $region2: #{run.1} parent=0 // pred_check
    _
  $region3: #{run.1} parent=0 // pred_check_branch
    %10 = sbr.rel (%p7) target = $region5
  $region4: #{run.1} parent=0 // pred_region
    %s26 = sand.u32 4, 7
    %p27 = scmp.eq.s32.totalorder %s26, 0
    %p28 = pneg %p27
    // Predicated region
    $region17: #{run.1} parent=4 // pred_check
      _
    $region18: #{run.1} parent=4 // pred_check_branch
      %30 = sbr.rel (%p27) target = $region20
    $region19: #{run.1} parent=4 // pred_region
      %s31 = sand.u32 4, 7
      %s32 = ssub.s32 4, %s31
      %s33 = scalar_lea.vmem %s0, %s32
      %s34 = ssub.s32 4, %s31
      %s35 = scalar_lea.vmem %s1, %s34
      %s36 = sshll.u32 1, %s31
      %s37 = ssub.s32 %s36, 1
      loop: start=0, step=1, limit=1
      $region21: #{run.1} parent=19 // loop_pre_header
        _
      $region22: #{run.1} parent=19 // loop_header
        %s39 = sphi 0, %s43
        %p40 = scmp.ge.s32.totalorder %s39, 1
        %s44 = sphi %s33, %s33
        %s45 = sphi %s35, %s35
      $region23: #{run.1} parent=19 // loop_header_branch
        %42 = sbr.rel (%p40) target = $region27
      $region24: #{run.1} parent=19 // loop_body
        %v46 = vld [vmem:[%s44] sm:%s37]
        %47 = vst [vmem:[%s45] sm:%s37] %v46
      $region25: #{run.1} parent=19 // loop_footer
        %s43 = sadd.s32 1, %s39
      $region26: #{run.1} parent=19 // loop_footer_branch
        %38 = sbr.rel target = $region22
      $region27: #{run.1} parent=19 // loop_exit
        _
    $region20: #{run.1} parent=4 // pred_fallthru
      _
  $region5: #{run.1} parent=0 // pred_fallthru
    _
  // Predicated region
  $region6: #{run.1} parent=0 // pred_check
    %p11 = pneg %p7
  $region7: #{run.1} parent=0 // pred_check_branch
    %13 = sbr.rel (%p11) target = $region9
  $region8: #{run.1} parent=0 // pred_region
    %s14 = sshll.u32 1, 4
    %s15 = ssub.s32 %s14, 1
    loop: start=0, step=1, limit=1
    $region10: #{run.1} parent=8 // loop_pre_header
      _
    $region11: #{run.1} parent=8 // loop_header
      %s17 = sphi 0, %s21
      %p18 = scmp.ge.s32.totalorder %s17, 1
      %s22 = sphi %s0, %s0
      %s23 = sphi %s1, %s1
    $region12: #{run.1} parent=8 // loop_header_branch
      %20 = sbr.rel (%p18) target = $region16
    $region13: #{run.1} parent=8 // loop_body
      %v24 = vld [vmem:[%s22] sm:%s15]
      %25 = vst [vmem:[%s23] sm:%s15] %v24
    $region14: #{run.1} parent=8 // loop_footer
      %s21 = sadd.s32 1, %s17
    $region15: #{run.1} parent=8 // loop_footer_branch
      %16 = sbr.rel target = $region11
    $region16: #{run.1} parent=8 // loop_exit
      _
  $region9: #{run.1} parent=0 // pred_fallthru
    _
  // Predicated region
  $region28: #{run.1} parent=0 // pred_check
    _
  $region29: #{run.1} parent=0 // pred_check_branch
    %50 = sbr.rel (0) target = $region31
  $region30: #{run.1} parent=0 // pred_region
    %51 = vsyncadd [#allocation2], 64
  $region31: #{run.1} parent=0 // pred_fallthru
    _
  %53 = dma.done [#allocation2], 64
  %54 = vsyncmov [#allocation2]
  %s55 = vpop.sfrf %54
  %p56 = scmp.eq.s32.totalorder %s55, 0
  %p57 = pneg %p56
  %59 = shalt.err (%p57)

</llo_original>
